<compile_context>
chip_gen: v7x
topology: tpu7x:2x2x1
jax: 0.10.0
libtpu: 0.0.40
codegen_flags: <defaults>
</compile_context>

<pallas_src>
import functools

import jax
import jax.numpy as jnp
from jax.experimental import pallas as pl
from jax.experimental.pallas import tpu as pltpu


def _round_up(x, m):
    return ((x + m - 1) // m) * m


def _classify_kernel(x_ref, w1_ref, bias_ref, w2_ref, b2_ref, o_ref, acc_ref,
                     *, s_total, pad_cols):
    s = pl.program_id(1)

    @pl.when(s == 0)
    def _init():
        acc_ref[...] = jnp.zeros_like(acc_ref)

    # ---- 1x1 conv as a channel matmul (bf16 MXU operands, f32 accumulate);
    #      BN scale already folded into w1; add bias; SiLU.  h is (Chid, TS).
    x = x_ref[0].astype(jnp.bfloat16)                               # (Cin, TS)
    h = jnp.dot(w1_ref[...], x, preferred_element_type=jnp.float32)  # (Chid,TS)
    h = h + bias_ref[...]                          # (Chid,1) lane-broadcast add
    h = h * jax.nn.sigmoid(h)                      # SiLU

    # ---- fused global average pool: per-tile reduction as pure VPU adds ----
    ts = h.shape[-1]
    if ts % 128 == 0:
        part = h[:, 0:128]
        for j in range(1, ts // 128):
            part = part + h[:, j * 128:(j + 1) * 128]
        acc_ref[...] += part                       # lane-dense (Chid,128) acc
    else:
        # ragged single-tile spatial extent: one cross-lane reduce per image
        acc_ref[:, 0:1] += jnp.sum(h, axis=-1, keepdims=True)

    # ---- epilogue on the last spatial tile: mean, linear, softmax ----
    @pl.when(s == pl.num_programs(1) - 1)
    def _finalize():
        pooled = jnp.sum(acc_ref[...], axis=-1, keepdims=True)      # (Chid, 1)
        if pad_cols:
            # padded spatial columns are x == 0 -> each contributed silu(bias)
            b = bias_ref[...]
            pooled = pooled - pad_cols * (b * jax.nn.sigmoid(b))
        pooled = pooled * (1.0 / s_total)
        logits = jnp.dot(w2_ref[...], pooled.astype(jnp.bfloat16),
                         preferred_element_type=jnp.float32) + b2_ref[...]
        m = jnp.max(logits)
        e = jnp.exp(logits - m)
        d = jnp.sum(e).reshape(1, 1)
        probs = e * pl.reciprocal(d, approx=True)
        o_ref[0] = probs.astype(o_ref.dtype)                        # (NC_p, 1)


@functools.partial(jax.jit, static_argnames=("eps",))
def _classify_core(x_nchw, conv_w, bn_gamma, bn_beta, bn_mean, bn_var,
                   lin_w, lin_b, eps=1e-5):
    N, Cin, H, W = x_nchw.shape
    Chid = conv_w.shape[0]
    NC = lin_w.shape[0]
    S = H * W

    Chid_p = _round_up(Chid, 8)
    NC_p = _round_up(NC, 8)

    # NCHW -> (N, Cin, S) is a free reshape: no transpose, no dtype cast, no
    # extra HBM round trip of the activation before the kernel.
    x3 = x_nchw.reshape(N, Cin, S)

    # Spatial tiling: whole extent in one block when it fits comfortably,
    # otherwise 512-wide lane tiles (multiple of 128; friendly to v7x VMEM).
    if S <= 1024:
        TS, S_pad = S, S
    else:
        TS = 512
        S_pad = _round_up(S, TS)
        x3 = jnp.pad(x3, ((0, 0), (0, 0), (0, S_pad - S)))
    pad_cols = S_pad - S

    # BatchNorm (running stats) folded: scale into w1, shift into a bias add.
    scale = bn_gamma / jnp.sqrt(bn_var + eps)
    bias = bn_beta - bn_mean * scale
    w1 = conv_w.reshape(Chid, Cin) * scale[:, None]
    w1 = jnp.pad(w1, ((0, Chid_p - Chid), (0, 0))).astype(jnp.bfloat16)
    bias = jnp.pad(bias, (0, Chid_p - Chid)).reshape(Chid_p, 1).astype(jnp.float32)

    # Linear layer: w2 in bf16; b2 stays f32 so the -1e30 sentinel keeps
    # padded classes at ~0 probability after the in-kernel softmax.
    w2 = jnp.pad(lin_w, ((0, NC_p - NC), (0, Chid_p - Chid))).astype(jnp.bfloat16)
    b2 = jnp.pad(lin_b, (0, NC_p - NC),
                 constant_values=-1e30).reshape(NC_p, 1).astype(jnp.float32)

    kernel = functools.partial(_classify_kernel, s_total=S, pad_cols=pad_cols)

    # Explicit VMEM budget: double-buffered blocks + scratch + h intermediate,
    # with headroom, capped below v7x's 64 MiB physical VMEM per TensorCore.
    est = (2 * Cin * TS * 4            # x tile, double-buffered, f32
           + 2 * Chid_p * Cin * 2      # w1 (bf16)
           + 2 * Chid_p * 4            # bias
           + 2 * NC_p * Chid_p * 2     # w2 (bf16)
           + 2 * NC_p * 4              # b2
           + 2 * NC_p * 4              # output block
           + Chid_p * 128 * 4          # pooled-sum accumulator scratch
           + Chid_p * TS * 4)          # h intermediate (compiler temp)
    vmem_limit = int(min(max(2 * est + (4 << 20), 16 << 20), 56 << 20))

    out = pl.pallas_call(
        kernel,
        out_shape=jax.ShapeDtypeStruct((N, NC_p, 1), jnp.float32),
        grid_spec=pltpu.PrefetchScalarGridSpec(
            num_scalar_prefetch=0,
            grid=(N, S_pad // TS),
            in_specs=[
                pl.BlockSpec((1, Cin, TS), lambda n, s: (n, 0, s)),   # x (NCHW)
                pl.BlockSpec((Chid_p, Cin), lambda n, s: (0, 0)),     # w1 (BN folded)
                pl.BlockSpec((Chid_p, 1), lambda n, s: (0, 0)),       # bias
                pl.BlockSpec((NC_p, Chid_p), lambda n, s: (0, 0)),    # w2
                pl.BlockSpec((NC_p, 1), lambda n, s: (0, 0)),         # b2
            ],
            out_specs=pl.BlockSpec((1, NC_p, 1), lambda n, s: (n, 0, 0)),
            scratch_shapes=[pltpu.VMEM((Chid_p, 128), jnp.float32)],
        ),
        compiler_params=pltpu.CompilerParams(
            dimension_semantics=("parallel", "arbitrary"),
            vmem_limit_bytes=vmem_limit),
    )(x3, w1, bias, w2, b2)

    return out.reshape(N, NC_p)[:, :NC]


def classify(x, conv_w, bn_gamma, bn_beta, bn_mean, bn_var, lin_w, lin_b,
             eps=1e-5):
    """Classify.forward (eval mode). x: (N, Cin, H, W) or a list concatenated on C."""
    if isinstance(x, (list, tuple)):
        x = jnp.concatenate(x, axis=1)
    return _classify_core(x, conv_w, bn_gamma, bn_beta, bn_mean, bn_var,
                          lin_w, lin_b, eps=eps)


def _reference(x, conv_w, bn_gamma, bn_beta, bn_mean, bn_var, lin_w, lin_b,
               eps=1e-5):
    Chid, Cin = conv_w.shape[0], conv_w.shape[1]
    w1 = conv_w.reshape(Chid, Cin)
    y = jnp.einsum('nchw,oc->nohw', x, w1)
    scale = bn_gamma / jnp.sqrt(bn_var + eps)
    bias = bn_beta - bn_mean * scale
    y = y * scale[None, :, None, None] + bias[None, :, None, None]
    y = y * jax.nn.sigmoid(y)
    pooled = y.mean(axis=(2, 3))
    logits = pooled @ lin_w.T + lin_b
    return jax.nn.softmax(logits, axis=-1)


if __name__ == "__main__":
    N, Cin, H, W = 2, 4, 16, 16
    hidden, num_classes = 32, 10

    key = jax.random.PRNGKey(0)
    kx, kw, kg, kb, km, kv, klw, klb = jax.random.split(key, 8)
    x = jax.random.normal(kx, (N, Cin, H, W), dtype=jnp.float32)
    conv_w = jax.random.normal(kw, (hidden, Cin, 1, 1), dtype=jnp.float32) * 0.1
    bn_gamma = jax.random.normal(kg, (hidden,), dtype=jnp.float32) * 0.1 + 1.0
    bn_beta = jax.random.normal(kb, (hidden,), dtype=jnp.float32) * 0.1
    bn_mean = jax.random.normal(km, (hidden,), dtype=jnp.float32) * 0.1
    bn_var = jax.random.uniform(kv, (hidden,), dtype=jnp.float32,
                                minval=0.5, maxval=1.5)
    lin_w = jax.random.normal(klw, (num_classes, hidden), dtype=jnp.float32) * 0.1
    lin_b = jax.random.normal(klb, (num_classes,), dtype=jnp.float32) * 0.1

    y = classify(x, conv_w, bn_gamma, bn_beta, bn_mean, bn_var, lin_w, lin_b)
    jax.block_until_ready(y)
    assert y.shape == (N, num_classes), y.shape

    y_ref = _reference(x, conv_w, bn_gamma, bn_beta, bn_mean, bn_var, lin_w, lin_b)
    err = float(jnp.max(jnp.abs(y - y_ref)))
    assert err < 2e-2, f"max abs err vs reference: {err}"
    assert float(jnp.max(jnp.abs(jnp.sum(y, axis=1) - 1.0))) < 3e-3

    print("KERNEL_OK")
</pallas_src>

<mosaic_0001>
module attributes {stable_mosaic.version = 11 : i64} {
  func.func @_classify_kernel(%arg0: i32, %arg1: i32, %arg2: memref<1x4x256xf32, #tpu.memory_space<vmem>>, %arg3: memref<32x4xbf16, #tpu.memory_space<vmem>>, %arg4: memref<32x1xf32, #tpu.memory_space<vmem>>, %arg5: memref<16x32xbf16, #tpu.memory_space<vmem>>, %arg6: memref<16x1xf32, #tpu.memory_space<vmem>>, %arg7: memref<1x16x1xf32, #tpu.memory_space<vmem>>, %arg8: memref<32x128xf32, #tpu.memory_space<vmem>>) attributes {dimension_semantics = [#tpu.dimension_semantics<parallel>, #tpu.dimension_semantics<arbitrary>], iteration_bounds = array<i64: 2, 1>, scalar_prefetch = 0 : i64, scratch_operands = 1 : i64, tpu.core_type = #tpu.core_type<tc>, window_params = [{transform_indices = @transform_0, window_bounds = array<i64: 1, 4, 256>}, {pipeline_mode = #tpu.pipeline_mode<synchronous>, transform_indices = @transform_1, window_bounds = array<i64: 32, 4>}, {pipeline_mode = #tpu.pipeline_mode<synchronous>, transform_indices = @transform_2, window_bounds = array<i64: 32, 1>}, {pipeline_mode = #tpu.pipeline_mode<synchronous>, transform_indices = @transform_3, window_bounds = array<i64: 16, 32>}, {pipeline_mode = #tpu.pipeline_mode<synchronous>, transform_indices = @transform_4, window_bounds = array<i64: 16, 1>}, {transform_indices = @transform_5, window_bounds = array<i64: 1, 16, 1>}]} {
    %c0_i32 = arith.constant 0 : i32
    %0 = arith.cmpi eq, %arg1, %c0_i32 : i32
    %1 = arith.extui %0 : i1 to i32
    %c0_i32_0 = arith.constant 0 : i32
    %2 = arith.cmpi ne, %1, %c0_i32_0 : i32
    scf.if %2 {
      %cst_14 = arith.constant 0.000000e+00 : f32
      %26 = vector.broadcast %cst_14 : f32 to vector<32x128xf32>
      %c0_15 = arith.constant 0 : index
      %c0_16 = arith.constant 0 : index
      %27 = vector.load %arg8[%c0_15, %c0_16] : memref<32x128xf32, #tpu.memory_space<vmem>>, vector<32x128xf32>
      tpu.vector_store %arg8[%c0_15, %c0_16], %26 {strides = array<i32>} : memref<32x128xf32, #tpu.memory_space<vmem>>, vector<32x128xf32>,
    } else {
    }
    %c0 = arith.constant 0 : index
    %c0_1 = arith.constant 0 : index
    %c0_2 = arith.constant 0 : index
    %3 = vector.load %arg2[%c0, %c0_1, %c0_2] : memref<1x4x256xf32, #tpu.memory_space<vmem>>, vector<1x4x256xf32>
    %4 = vector.shape_cast %3 : vector<1x4x256xf32> to vector<4x256xf32>
    %5 = arith.truncf %4 : vector<4x256xf32> to vector<4x256xbf16>
    %c0_3 = arith.constant 0 : index
    %c0_4 = arith.constant 0 : index
    %6 = vector.load %arg3[%c0_3, %c0_4] : memref<32x4xbf16, #tpu.memory_space<vmem>>, vector<32x4xbf16>
    %cst = arith.constant dense<0.000000e+00> : vector<32x256xf32>
    %7 = tpu.matmul %6, %5, %cst {dimension_numbers = #tpu.dot_dimension_numbers<[1], [0], [0], [1], [0, 0, 1, 1], [], []>} : vector<32x4xbf16>, vector<4x256xbf16>, vector<32x256xf32> -> vector<32x256xf32>
    %c0_5 = arith.constant 0 : index
    %c0_6 = arith.constant 0 : index
    %8 = vector.load %arg4[%c0_5, %c0_6] : memref<32x1xf32, #tpu.memory_space<vmem>>, vector<32x1xf32>
    %9 = vector.broadcast %8 : vector<32x1xf32> to vector<32x256xf32>
    %10 = arith.addf %7, %9 : vector<32x256xf32>
    %11 = arith.negf %10 : vector<32x256xf32>
    %12 = math.exp %11 : vector<32x256xf32>
    %cst_7 = arith.constant 1.000000e+00 : f32
    %13 = vector.broadcast %cst_7 : f32 to vector<32x256xf32>
    %14 = arith.addf %13, %12 : vector<32x256xf32>
    %15 = arith.divf %13, %14 : vector<32x256xf32>
    %16 = arith.mulf %10, %15 : vector<32x256xf32>
    %17 = vector.extract_strided_slice %16 {offsets = [0, 0], sizes = [32, 128], strides = [1, 1]} : vector<32x256xf32> to vector<32x128xf32>
    %18 = vector.extract_strided_slice %16 {offsets = [0, 128], sizes = [32, 128], strides = [1, 1]} : vector<32x256xf32> to vector<32x128xf32>
    %19 = arith.addf %17, %18 : vector<32x128xf32>
    %c0_8 = arith.constant 0 : index
    %c0_9 = arith.constant 0 : index
    %20 = vector.load %arg8[%c0_8, %c0_9] : memref<32x128xf32, #tpu.memory_space<vmem>>, vector<32x128xf32>
    %21 = arith.addf %20, %19 : vector<32x128xf32>
    %c0_10 = arith.constant 0 : index
    %c0_11 = arith.constant 0 : index
    %22 = vector.load %arg8[%c0_10, %c0_11] : memref<32x128xf32, #tpu.memory_space<vmem>>, vector<32x128xf32>
    tpu.vector_store %arg8[%c0_10, %c0_11], %21 {strides = array<i32>} : memref<32x128xf32, #tpu.memory_space<vmem>>, vector<32x128xf32>,
    %c0_i32_12 = arith.constant 0 : i32
    %23 = arith.cmpi eq, %arg1, %c0_i32_12 : i32
    %24 = arith.extui %23 : i1 to i32
    %c0_i32_13 = arith.constant 0 : i32
    %25 = arith.cmpi ne, %24, %c0_i32_13 : i32
    scf.if %25 {
      %c0_14 = arith.constant 0 : index
      %c0_15 = arith.constant 0 : index
      %26 = vector.load %arg8[%c0_14, %c0_15] : memref<32x128xf32, #tpu.memory_space<vmem>>, vector<32x128xf32>
      %cst_16 = arith.constant dense<0.000000e+00> : vector<32xf32>
      %27 = vector.multi_reduction <add>, %26, %cst_16 [1] : vector<32x128xf32> to vector<32xf32>
      %28 = vector.shape_cast %27 : vector<32xf32> to vector<32x1xf32>
      %cst_17 = arith.constant 3.906250e-03 : f32
      %29 = vector.broadcast %cst_17 : f32 to vector<32x1xf32>
      %30 = arith.mulf %28, %29 : vector<32x1xf32>
      %c0_18 = arith.constant 0 : index
      %c0_19 = arith.constant 0 : index
      %31 = vector.load %arg5[%c0_18, %c0_19] : memref<16x32xbf16, #tpu.memory_space<vmem>>, vector<16x32xbf16>
      %32 = arith.truncf %30 : vector<32x1xf32> to vector<32x1xbf16>
      %cst_20 = arith.constant dense<0.000000e+00> : vector<16x1xf32>
      %33 = tpu.matmul %31, %32, %cst_20 {dimension_numbers = #tpu.dot_dimension_numbers<[1], [0], [0], [1], [0, 0, 1, 1], [], []>} : vector<16x32xbf16>, vector<32x1xbf16>, vector<16x1xf32> -> vector<16x1xf32>
      %c0_21 = arith.constant 0 : index
      %c0_22 = arith.constant 0 : index
      %34 = vector.load %arg6[%c0_21, %c0_22] : memref<16x1xf32, #tpu.memory_space<vmem>>, vector<16x1xf32>
      %35 = arith.addf %33, %34 : vector<16x1xf32>
      %36 = vector.shape_cast %35 : vector<16x1xf32> to vector<1x16x1xf32>
      %cst_23 = arith.constant dense<0xFF800000> : vector<1xf32>
      %37 = vector.multi_reduction <maximumf>, %36, %cst_23 [1, 2] : vector<1x16x1xf32> to vector<1xf32>
      %38 = vector.shape_cast %37 : vector<1xf32> to vector<1x1x1xf32>
      %39 = vector.extract %38[0, 0, 0] : f32 from vector<1x1x1xf32>
      %40 = vector.broadcast %39 : f32 to vector<16x1xf32>
      %41 = arith.subf %35, %40 : vector<16x1xf32>
      %42 = math.exp %41 : vector<16x1xf32>
      %43 = vector.shape_cast %42 : vector<16x1xf32> to vector<1x16x1xf32>
      %cst_24 = arith.constant dense<0.000000e+00> : vector<1xf32>
      %44 = vector.multi_reduction <add>, %43, %cst_24 [1, 2] : vector<1x16x1xf32> to vector<1xf32>
      %45 = vector.shape_cast %44 : vector<1xf32> to vector<1x1x1xf32>
      %46 = vector.extract %45[0, 0, 0] : f32 from vector<1x1x1xf32>
      %47 = vector.broadcast %46 : f32 to vector<1x1xf32>
      %48 = tpu.reciprocal %47 {approx = true} : vector<1x1xf32> -> vector<1x1xf32>
      %49 = vector.broadcast %48 : vector<1x1xf32> to vector<16x1xf32>
      %50 = arith.mulf %42, %49 : vector<16x1xf32>
      %c0_25 = arith.constant 0 : index
      %c0_26 = arith.constant 0 : index
      %c0_27 = arith.constant 0 : index
      %51 = vector.load %arg7[%c0_25, %c0_26, %c0_27] : memref<1x16x1xf32, #tpu.memory_space<vmem>>, vector<1x16x1xf32>
      %52 = vector.shape_cast %51 : vector<1x16x1xf32> to vector<16x1xf32>
      %53 = vector.shape_cast %50 : vector<16x1xf32> to vector<1x16x1xf32>
      tpu.vector_store %arg7[%c0_25, %c0_26, %c0_27], %53 {strides = array<i32>} : memref<1x16x1xf32, #tpu.memory_space<vmem>>, vector<1x16x1xf32>,
    } else {
    }
    return
  }
  func.func @transform_0(%arg0: i32, %arg1: i32) -> (i32, i32, i32) {
    %c0_i32 = arith.constant 0 : i32
    %c0_i32_0 = arith.constant 0 : i32
    return %arg0, %c0_i32, %arg1 : i32, i32, i32
  }
  func.func @transform_1(%arg0: i32, %arg1: i32) -> (i32, i32) {
    %c0_i32 = arith.constant 0 : i32
    %c0_i32_0 = arith.constant 0 : i32
    %c0_i32_1 = arith.constant 0 : i32
    return %c0_i32, %c0_i32_0 : i32, i32
  }
  func.func @transform_2(%arg0: i32, %arg1: i32) -> (i32, i32) {
    %c0_i32 = arith.constant 0 : i32
    %c0_i32_0 = arith.constant 0 : i32
    %c0_i32_1 = arith.constant 0 : i32
    return %c0_i32, %c0_i32_0 : i32, i32
  }
  func.func @transform_3(%arg0: i32, %arg1: i32) -> (i32, i32) {
    %c0_i32 = arith.constant 0 : i32
    %c0_i32_0 = arith.constant 0 : i32
    %c0_i32_1 = arith.constant 0 : i32
    return %c0_i32, %c0_i32_0 : i32, i32
  }
  func.func @transform_4(%arg0: i32, %arg1: i32) -> (i32, i32) {
    %c0_i32 = arith.constant 0 : i32
    %c0_i32_0 = arith.constant 0 : i32
    %c0_i32_1 = arith.constant 0 : i32
    return %c0_i32, %c0_i32_0 : i32, i32
  }
  func.func @transform_5(%arg0: i32, %arg1: i32) -> (i32, i32, i32) {
    %c0_i32 = arith.constant 0 : i32
    %c0_i32_0 = arith.constant 0 : i32
    %c0_i32_1 = arith.constant 0 : i32
    return %arg0, %c0_i32, %c0_i32_0 : i32, i32, i32
  }
}

</mosaic_0001>

<llo_original>
// kernel: _classify_core.1
$region0: #{_classify_core.1}
  #allocation0 [shape = 'u32[]', space=smem, size = 0x4, offset = 0x4, fixed_abs, tag = 'smem constant byte address 0x4 - core index']
  #allocation1 [shape = 'u32[144,128]{1,0:T(1,128)}', space=vmem, size = 0x12000, scoped, tag = 'internal scratch']
  #allocation2 [shape = 'f32[32,128]{1,0:T(8,128)}', space=vmem, size = 0x4000, scoped, tag = 'scratch operand']
  %s0 = inlined_call_operand.vmem [shape: f32[2,4,256], index: 0, kind: input, shape index: {}]
  %s1 = inlined_call_operand.vmem [shape: bf16[32,4], index: 1, kind: input, shape index: {}]
  %s2 = inlined_call_operand.vmem [shape: f32[32,1], index: 2, kind: input, shape index: {}]
  %s3 = inlined_call_operand.vmem [shape: bf16[16,32], index: 3, kind: input, shape index: {}]
  %s4 = inlined_call_operand.vmem [shape: f32[16,1], index: 4, kind: input, shape index: {}]
  %s5 = inlined_call_operand.vmem [shape: f32[2,16,1], index: 5, kind: output, shape index: {}]
  %s6 = sld [smem:[#allocation0]]
  $region61: #{_classify_core.1} parent=0
    _
  %s8 = ssub.s32 1, %s6
  %s9 = scalar_select 0, %s8, %s6
  loop: start=0, step=1, limit=4
  $region2: #{_classify_core.1} parent=0 // loop_pre_header
    _
  $region3: #{_classify_core.1} parent=0 // loop_header
    %s11 = sphi 0, %s15
    %p12 = scmp.ge.s32.totalorder %s11, 4
    %s18 = sphi 0, %s30
    %s19 = sphi 0, %s26
    %s20 = sphi 0, %s18
    %s21 = sphi 0, %s19
    %s22 = sphi 0, %s20
    %s23 = sphi 0, %s21
    %s35 = sphi 0, %s37
    %s38 = sphi 0, %s35
    %s39 = sphi 0, %s38
    %s55 = sphi 0, %s39
    %s59 = sphi 0, %s59
    %s61 = sphi 0, %s59
    %s62 = sphi 0, %s61
    %s76 = sphi 0, %s62
    %s80 = sphi 0, %s80
    %s82 = sphi 0, %s80
    %s83 = sphi 0, %s82
    %s97 = sphi 0, %s83
    %s101 = sphi 0, %s101
    %s103 = sphi 0, %s101
    %s104 = sphi 0, %s103
    %s118 = sphi 0, %s104
    %s122 = sphi 0, %s122
    %s124 = sphi 0, %s122
    %s125 = sphi 0, %s124
    %s139 = sphi 0, %s125
    %s145 = sphi 0, %s147
    %s148 = sphi 0, %s145
    %s149 = sphi 0, %s148
    %s165 = sphi 0, %s149
  $region4: #{_classify_core.1} parent=0 // loop_header_branch
    %14 = sbr.rel (%p12) target = $region8
  $region5: #{_classify_core.1} parent=0 // loop_body
    %s16 = ssub.s32 %s11, 1
    %s17 = ssub.s32 %s11, 2
    %s24 = sadd.s32 1, %s19
    %p25 = scmp.ge.s32.totalorder %s24, 1
    %s26 = scalar_select %p25, 0, %s24
    %s27 = sadd.s32 1, %s18
    %s28 = scalar_select %p25, %s27, %s18
    %p29 = scmp.ge.s32.totalorder %s28, 2
    %s30 = scalar_select %p29, 0, %s28
    %s31 = ssub.s32 %s18, %s30
    %s32 = ssub.s32 %s19, %s26
    %s33 = sor.u32 %s31, %s32
    %p34 = scmp.eq.s32.totalorder %s33, 0
    %s36 = sadd.s32 %s35, 1
    %s37 = scalar_select %p34, %s35, %s36
    %p40 = pneg %p34
    %p41 = scmp.eq.s32.totalorder %s11, 1
    %p42 = por %p40, %p41
    %p43 = scmp.ne.s32.totalorder %s35, %s38
    %p44 = scmp.eq.s32.totalorder %s11, 0
    %p45 = por %p43, %p44
    %p46 = scmp.ne.s32.totalorder %s35, %s38
    %p47 = scmp.eq.s32.totalorder %s16, 1
    %p48 = por %p46, %p47
    %p49 = scmp.ne.s32.totalorder %s38, %s39
    %p50 = scmp.eq.s32.totalorder %s16, 0
    %p51 = por %p49, %p50
    %p52 = scmp.ne.s32.totalorder %s38, %s39
    %p53 = scmp.eq.s32.totalorder %s17, 1
    %p54 = por %p52, %p53
    %p56 = scmp.ne.s32.totalorder %s39, %s55
    %p57 = scmp.eq.s32.totalorder %s17, 0
    %p58 = por %p56, %p57
    %s60 = sadd.s32 %s59, 1
    %p63 = scmp.eq.s32.totalorder %s11, 1
    %p64 = scmp.ne.s32.totalorder %s59, %s61
    %p65 = scmp.eq.s32.totalorder %s11, 0
    %p66 = por %p64, %p65
    %p67 = scmp.ne.s32.totalorder %s59, %s61
    %p68 = scmp.eq.s32.totalorder %s16, 1
    %p69 = por %p67, %p68
    %p70 = scmp.ne.s32.totalorder %s61, %s62
    %p71 = scmp.eq.s32.totalorder %s16, 0
    %p72 = por %p70, %p71
    %p73 = scmp.ne.s32.totalorder %s61, %s62
    %p74 = scmp.eq.s32.totalorder %s17, 1
    %p75 = por %p73, %p74
    %p77 = scmp.ne.s32.totalorder %s62, %s76
    %p78 = scmp.eq.s32.totalorder %s17, 0
    %p79 = por %p77, %p78
    %s81 = sadd.s32 %s80, 1
    %p84 = scmp.eq.s32.totalorder %s11, 1
    %p85 = scmp.ne.s32.totalorder %s80, %s82
    %p86 = scmp.eq.s32.totalorder %s11, 0
    %p87 = por %p85, %p86
    %p88 = scmp.ne.s32.totalorder %s80, %s82
    %p89 = scmp.eq.s32.totalorder %s16, 1
    %p90 = por %p88, %p89
    %p91 = scmp.ne.s32.totalorder %s82, %s83
    %p92 = scmp.eq.s32.totalorder %s16, 0
    %p93 = por %p91, %p92
    %p94 = scmp.ne.s32.totalorder %s82, %s83
    %p95 = scmp.eq.s32.totalorder %s17, 1
    %p96 = por %p94, %p95
    %p98 = scmp.ne.s32.totalorder %s83, %s97
    %p99 = scmp.eq.s32.totalorder %s17, 0
    %p100 = por %p98, %p99
    %s102 = sadd.s32 %s101, 1
    %p105 = scmp.eq.s32.totalorder %s11, 1
    %p106 = scmp.ne.s32.totalorder %s101, %s103
    %p107 = scmp.eq.s32.totalorder %s11, 0
    %p108 = por %p106, %p107
    %p109 = scmp.ne.s32.totalorder %s101, %s103
    %p110 = scmp.eq.s32.totalorder %s16, 1
    %p111 = por %p109, %p110
    %p112 = scmp.ne.s32.totalorder %s103, %s104
    %p113 = scmp.eq.s32.totalorder %s16, 0
    %p114 = por %p112, %p113
    %p115 = scmp.ne.s32.totalorder %s103, %s104
    %p116 = scmp.eq.s32.totalorder %s17, 1
    %p117 = por %p115, %p116
    %p119 = scmp.ne.s32.totalorder %s104, %s118
    %p120 = scmp.eq.s32.totalorder %s17, 0
    %p121 = por %p119, %p120
    %s123 = sadd.s32 %s122, 1
    %p126 = scmp.eq.s32.totalorder %s11, 1
    %p127 = scmp.ne.s32.totalorder %s122, %s124
    %p128 = scmp.eq.s32.totalorder %s11, 0
    %p129 = por %p127, %p128
    %p130 = scmp.ne.s32.totalorder %s122, %s124
    %p131 = scmp.eq.s32.totalorder %s16, 1
    %p132 = por %p130, %p131
    %p133 = scmp.ne.s32.totalorder %s124, %s125
    %p134 = scmp.eq.s32.totalorder %s16, 0
    %p135 = por %p133, %p134
    %p136 = scmp.ne.s32.totalorder %s124, %s125
    %p137 = scmp.eq.s32.totalorder %s17, 1
    %p138 = por %p136, %p137
    %p140 = scmp.ne.s32.totalorder %s125, %s139
    %p141 = scmp.eq.s32.totalorder %s17, 0
    %p142 = por %p140, %p141
    %s143 = ssub.s32 %s18, %s30
    %p144 = scmp.eq.s32.totalorder %s143, 0
    %s146 = sadd.s32 %s145, 1
    %s147 = scalar_select %p144, %s145, %s146
    %p150 = pneg %p144
    %p151 = scmp.eq.s32.totalorder %s11, 1
    %p152 = por %p150, %p151
    %p153 = scmp.ne.s32.totalorder %s145, %s148
    %p154 = scmp.eq.s32.totalorder %s11, 0
    %p155 = por %p153, %p154
    %p156 = scmp.ne.s32.totalorder %s145, %s148
    %p157 = scmp.eq.s32.totalorder %s16, 1
    %p158 = por %p156, %p157
    %p159 = scmp.ne.s32.totalorder %s148, %s149
    %p160 = scmp.eq.s32.totalorder %s16, 0
    %p161 = por %p159, %p160
    %p162 = scmp.ne.s32.totalorder %s148, %s149
    %p163 = scmp.eq.s32.totalorder %s17, 1
    %p164 = por %p162, %p163
    %p166 = scmp.ne.s32.totalorder %s149, %s165
    %p167 = scmp.eq.s32.totalorder %s17, 0
    %p168 = por %p166, %p167
    %p169 = scmp.le.s32.totalorder 1, %s11
    %p170 = scmp.lt.s32.totalorder %s11, 3
    %p171 = pnand %p169, %p170
    %p172 = pneg %p171
    // Predicated region
    $region9: #{_classify_core.1} parent=5 // pred_check
      _
    $region10: #{_classify_core.1} parent=5 // pred_check_branch
      %174 = sbr.rel (%p171) target = $region12
    $region11: #{_classify_core.1} parent=5 // pred_region
      %s175 = ssub.s32 %s11, 1
      // Predicated region
      $region13: #{_classify_core.1} parent=11 // pred_check
        %p176 = pneg %p72
      $region14: #{_classify_core.1} parent=11 // pred_check_branch
        %178 = sbr.rel (%p176) target = $region16
      $region15: #{_classify_core.1} parent=11 // pred_region
        _
      $region16: #{_classify_core.1} parent=11 // pred_fallthru
        _
      // Predicated region
      $region17: #{_classify_core.1} parent=11 // pred_check
        %p179 = pneg %p93
      $region18: #{_classify_core.1} parent=11 // pred_check_branch
        %181 = sbr.rel (%p179) target = $region20
      $region19: #{_classify_core.1} parent=11 // pred_region
        _
      $region20: #{_classify_core.1} parent=11 // pred_fallthru
        _
      // Predicated region
      $region21: #{_classify_core.1} parent=11 // pred_check
        %p182 = pneg %p114
      $region22: #{_classify_core.1} parent=11 // pred_check_branch
        %184 = sbr.rel (%p182) target = $region24
      $region23: #{_classify_core.1} parent=11 // pred_region
        _
      $region24: #{_classify_core.1} parent=11 // pred_fallthru
        _
      // Predicated region
      $region25: #{_classify_core.1} parent=11 // pred_check
        %p185 = pneg %p135
      $region26: #{_classify_core.1} parent=11 // pred_check_branch
        %187 = sbr.rel (%p185) target = $region28
      $region27: #{_classify_core.1} parent=11 // pred_region
        _
      $region28: #{_classify_core.1} parent=11 // pred_fallthru
        _
    $region12: #{_classify_core.1} parent=5 // pred_fallthru
      _
    %p188 = scmp.lt.s32.totalorder %s11, 2
    // Predicated region
    $region29: #{_classify_core.1} parent=5 // pred_check
      %p189 = pneg %p188
    $region30: #{_classify_core.1} parent=5 // pred_check_branch
      %191 = sbr.rel (%p189) target = $region32
    $region31: #{_classify_core.1} parent=5 // pred_region
      // Predicated region
      $region33: #{_classify_core.1} parent=31 // pred_check
        %p192 = pneg %p45
      $region34: #{_classify_core.1} parent=31 // pred_check_branch
        %194 = sbr.rel (%p192) target = $region36
      $region35: #{_classify_core.1} parent=31 // pred_region
        %s195 = smul.u32 2, %s19
        %p196 = scmp.lt.s32.totalorder %s18, 1
        %s197 = scalar_select %p196, %s18, 1
        %p198 = scmp.lt.s32.totalorder %s195, 1
        %s199 = scalar_select %p198, %s195, 1
        %s200 = smul.addr %s197, 2
        %s201 = sadd.s32 %s199, %s200
        %s202 = smul.addr %s201, 4
        %s203 = scalar_lea.vmem %s0, %s202
        %s204 = smul.u32 2, %s19
      $region36: #{_classify_core.1} parent=31 // pred_fallthru
        _
    $region32: #{_classify_core.1} parent=5 // pred_fallthru
      _
    %p205 = scmp.le.s32.totalorder 1, %s11
    %p206 = scmp.lt.s32.totalorder %s11, 3
    %p207 = pnand %p205, %p206
    %p208 = pneg %p207
    // Predicated region
    $region37: #{_classify_core.1} parent=5 // pred_check
      _
    $region38: #{_classify_core.1} parent=5 // pred_check_branch
      %210 = sbr.rel (%p207) target = $region40
    $region39: #{_classify_core.1} parent=5 // pred_region
      %s211 = ssub.s32 %s11, 1
      %s212 = smul.u32 2, %s21
      %p213 = scmp.lt.s32.totalorder %s20, 1
      %s214 = scalar_select %p213, %s20, 1
      %p215 = scmp.lt.s32.totalorder %s212, 1
      %s216 = scalar_select %p215, %s212, 1
      %s217 = smul.addr %s214, 2
      %s218 = sadd.s32 %s216, %s217
      %s219 = smul.addr %s218, 4
      %s220 = scalar_lea.vmem %s0, %s219
      %p221 = pneg %p51
      %p222 = pneg %p48
      %p223 = pneg %p72
      %p224 = pneg %p69
      %p225 = pneg %p93
      %p226 = pneg %p90
      %p227 = pneg %p114
      %p228 = pneg %p111
      %p229 = pneg %p135
      %p230 = pneg %p132
      %p231 = pneg %p161
      %p232 = pneg %p158
      %p233 = scmp.lt.s32.totalorder %s20, 1
      %s234 = scalar_select %p233, %s20, 1
      %s235 = smul.addr %s234, 2
      %s236 = smul.addr %s235, 8
      %s237 = scalar_lea.vmem %s5, %s236
      %s238 = smul.u32 2, %s21
      %p239 = scmp.lt.s32.totalorder %s20, 1
      %s240 = scalar_select %p239, %s20, 1
      %p241 = scmp.lt.s32.totalorder %s238, 1
      %s242 = scalar_select %p241, %s238, 1
      %s243 = smul.addr %s240, 2
      %s244 = sadd.s32 %s242, %s243
      %s245 = smul.addr %s244, 4
      %s246 = scalar_lea.vmem %s0, %s245
      %s247 = smul.u32 2, %s21
      %p248 = scmp.lt.s32.totalorder %s20, 1
      %s249 = scalar_select %p248, %s20, 1
      %s250 = smul.addr %s249, 2
      %s251 = smul.addr %s250, 8
      %s252 = scalar_lea.vmem %s5, %s251
      %p254 = scmp.eq.s32.totalorder %s21, 0
      // Predicated region
      $region41: #{_classify_core.1} parent=39 // pred_check
        %p255 = pneg %p254
      $region42: #{_classify_core.1} parent=39 // pred_check_branch
        %257 = sbr.rel (%p255) target = $region44
      $region43: #{_classify_core.1} parent=39 // pred_region
        %258 = vst [vmem:[#allocation2] sm:$0xff] 0.0
        %259 = vst [vmem:[#allocation2 + $0x8] sm:$0xff] 0.0
        %260 = vst [vmem:[#allocation2 + $0x10] sm:$0xff] 0.0
        %261 = vst [vmem:[#allocation2 + $0x18] sm:$0xff] 0.0
      $region44: #{_classify_core.1} parent=39 // pred_fallthru
        _
      %v262 = vld [vmem:[%s246] sm:$0xff]
      %v264 = vcombine.high %v262, %v262
      %v266 = vpack.c.bf16 %v262, %v262
      %v267 = vpack.c.bf16 %v264, %v264
      %v268 = vld [vmem:[%s1] sm:$0xf]
      %v269 = vld [vmem:[%s1 + $0x4] sm:$0xf]
      %v270 = vld [vmem:[%s1 + $0x8] sm:$0xf]
      %v271 = vld [vmem:[%s1 + $0xc] sm:$0xf]
      %v272 = vld [vmem:[%s2] sm:$0xff]
      %v273 = vld [vmem:[%s2 + $0x8] sm:$0xff]
      %v274 = vld [vmem:[%s2 + $0x10] sm:$0xff]
      %v275 = vld [vmem:[%s2 + $0x18] sm:$0xff]
      %277 = vset.pattern.permute.xlu0 0
      %278 = vperm.xlu0 %277, %v272
      %v279 = vpop.permute.xlu0 %278
      %282 = vset.pattern.permute.xlu0 0
      %283 = vperm.xlu0 %282, %v273
      %v284 = vpop.permute.xlu0 %283
      %287 = vset.pattern.permute.xlu0 0
      %288 = vperm.xlu0 %287, %v274
      %v289 = vpop.permute.xlu0 %288
      %292 = vset.pattern.permute.xlu0 0
      %293 = vperm.xlu0 %292, %v275
      %v294 = vpop.permute.xlu0 %293
      %v300 = vunpack.c.l.b16 %v268
      %v301 = vunpack.c.l.b16 %v269
      %v302 = vunpack.c.l.b16 %v270
      %v303 = vunpack.c.l.b16 %v271
      %v304 = vpack.c.b16 %v301, %v300
      %v305 = vpack.c.b16 %v303, %v302
      %vm306 = vcmask 31744
      %v308 = vsel %vm306, %v304, 0
      %v311 = vsel %vm306, %v305, 0
      %vm313 = vcmask 1041408
      %v315 = vsel %vm313, %v266, 0
      %v318 = vsel %vm313, %v267, 0
      %320 = vmatprep.subr.bf16.mxu0 %v318
      %321 = vmatpush1.bf16.msra.mxu0 %v315
      %322 = vmatprep.subr.bf16.mxu0 0
      %323 = vmatpush1.bf16.msra.mxu0 0
      %324 = vmatprep.subr.bf16.mxu0 0
      %325 = vmatpush1.bf16.msra.mxu0 0
      %326 = vmatprep.subr.bf16.mxu0 0
      %327 = vmatpush1.bf16.msra.mxu0 0
      %328 = vmatprep.subr.bf16.mxu0 0
      %329 = vmatpush1.bf16.msra.mxu0 0
      %330 = vmatprep.subr.bf16.mxu0 0
      %331 = vmatpush1.bf16.msra.mxu0 0
      %332 = vmatprep.subr.bf16.mxu0 0
      %333 = vmatpush1.bf16.msra.mxu0 0
      %334 = vmatprep.subr.bf16.mxu0 0
      %335 = vmatpush1.bf16.msra.mxu0 0
      %336 = vmatprep.subr.bf16.mxu0 0
      %337 = vmatpush1.bf16.msra.mxu0 0
      %338 = vmatprep.subr.bf16.mxu0 0
      %339 = vmatpush1.bf16.msra.mxu0 0
      %340 = vmatprep.subr.bf16.mxu0 0
      %341 = vmatpush1.bf16.msra.mxu0 0
      %342 = vmatprep.subr.bf16.mxu0 0
      %343 = vmatpush1.bf16.msra.mxu0 0
      %344 = vmatprep.subr.bf16.mxu0 0
      %345 = vmatpush1.bf16.msra.mxu0 0
      %346 = vmatprep.subr.bf16.mxu0 0
      %347 = vmatpush1.bf16.msra.mxu0 0
      %348 = vmatprep.subr.bf16.mxu0 0
      %349 = vmatpush1.bf16.msra.mxu0 0
      %350 = vmatprep.subr.bf16.mxu0 0
      %351 = vmatpush1.bf16.msra.mxu0 0
      %352 = vmatprep.mubr.bf16.mxu0 0
      %353 = vmatmul.mubr.bf16.gmra.mrb[0].mxu0 %v308
      %v354 = vpop.f32.mrb[0].mxu0
      %v355 = vadd.f32 %v279, %v354
      %v356 = vpop.f32.mrb[0].mxu0
      %v357 = vadd.f32 %v279, %v356
      %v358 = vpop.f32.mrb[0].mxu0
      %v359 = vadd.f32 %v284, %v358
      %v360 = vpop.f32.mrb[0].mxu0
      %v361 = vadd.f32 %v284, %v360
      %362 = vmatprep.mubr.bf16.mxu0 0
      %363 = vmatmul.mubr.bf16.gmra.mrb[0].mxu0 %v311
      %v364 = vpop.f32.mrb[0].mxu0
      %v365 = vadd.f32 %v289, %v364
      %v366 = vpop.f32.mrb[0].mxu0
      %v367 = vadd.f32 %v289, %v366
      %v368 = vpop.f32.mrb[0].mxu0
      %v369 = vadd.f32 %v294, %v368
      %v370 = vpop.f32.mrb[0].mxu0
      %v371 = vadd.f32 %v294, %v370
      %372 = vdwg.mxu0
      %v373 = vxor.u32 %v355, 2147483648
      %v374 = vxor.u32 %v357, 2147483648
      %v375 = vxor.u32 %v359, 2147483648
      %v376 = vxor.u32 %v361, 2147483648
      %v377 = vxor.u32 %v365, 2147483648
      %v378 = vxor.u32 %v367, 2147483648
      %v379 = vxor.u32 %v369, 2147483648
      %v380 = vxor.u32 %v371, 2147483648
      %v381 = vmul.f32 %v373, 1.442695
      %v382 = vpow.pop %v381
      %v383 = vmul.f32 %v374, 1.442695
      %v384 = vpow.pop %v383
      %v385 = vmul.f32 %v375, 1.442695
      %v386 = vpow.pop %v385
      %v387 = vmul.f32 %v376, 1.442695
      %v388 = vpow.pop %v387
      %v389 = vmul.f32 %v377, 1.442695
      %v390 = vpow.pop %v389
      %v391 = vmul.f32 %v378, 1.442695
      %v392 = vpow.pop %v391
      %v393 = vmul.f32 %v379, 1.442695
      %v394 = vpow.pop %v393
      %v395 = vmul.f32 %v380, 1.442695
      %v396 = vpow.pop %v395
      %v397 = vadd.f32 %v382, 1.0
      %v398 = vadd.f32 %v384, 1.0
      %v399 = vadd.f32 %v386, 1.0
      %v400 = vadd.f32 %v388, 1.0
      %v401 = vadd.f32 %v390, 1.0
      %v402 = vadd.f32 %v392, 1.0
      %v403 = vadd.f32 %v394, 1.0
      %v404 = vadd.f32 %v396, 1.0
      %v405 = vrcp.pop %v397
      %v406 = vmul.f32 1.0, %v405
      %v407 = vrcp.pop %v398
      %v408 = vmul.f32 1.0, %v407
      %v409 = vrcp.pop %v399
      %v410 = vmul.f32 1.0, %v409
      %v411 = vrcp.pop %v400
      %v412 = vmul.f32 1.0, %v411
      %v413 = vrcp.pop %v401
      %v414 = vmul.f32 1.0, %v413
      %v415 = vrcp.pop %v402
      %v416 = vmul.f32 1.0, %v415
      %v417 = vrcp.pop %v403
      %v418 = vmul.f32 1.0, %v417
      %v419 = vrcp.pop %v404
      %v420 = vmul.f32 1.0, %v419
      %v421 = vmul.f32 %v355, %v406
      %v422 = vmul.f32 %v357, %v408
      %v423 = vmul.f32 %v359, %v410
      %v424 = vmul.f32 %v361, %v412
      %v425 = vmul.f32 %v365, %v414
      %v426 = vmul.f32 %v367, %v416
      %v427 = vmul.f32 %v369, %v418
      %v428 = vmul.f32 %v371, %v420
      %v429 = vadd.f32 %v421, %v422
      %v430 = vadd.f32 %v423, %v424
      %v431 = vadd.f32 %v425, %v426
      %v432 = vadd.f32 %v427, %v428
      %v433 = vld [vmem:[#allocation2] sm:$0xff]
      %v434 = vld [vmem:[#allocation2 + $0x8] sm:$0xff]
      %v435 = vld [vmem:[#allocation2 + $0x10] sm:$0xff]
      %v436 = vld [vmem:[#allocation2 + $0x18] sm:$0xff]
      %v437 = vadd.f32 %v433, %v429
      %v438 = vadd.f32 %v434, %v430
      %v439 = vadd.f32 %v435, %v431
      %v440 = vadd.f32 %v436, %v432
      %441 = vst [vmem:[#allocation2] sm:$0xff] %v437
      %442 = vst [vmem:[#allocation2 + $0x8] sm:$0xff] %v438
      %443 = vst [vmem:[#allocation2 + $0x10] sm:$0xff] %v439
      %444 = vst [vmem:[#allocation2 + $0x18] sm:$0xff] %v440
      // Predicated region
      $region45: #{_classify_core.1} parent=39 // pred_check
        %p445 = pneg %p254
      $region46: #{_classify_core.1} parent=39 // pred_check_branch
        %447 = sbr.rel (%p445) target = $region48
      $region47: #{_classify_core.1} parent=39 // pred_region
        %v448 = vld [vmem:[#allocation2] sm:$0xff]
        %v449 = vld [vmem:[#allocation2 + $0x8] sm:$0xff]
        %v450 = vld [vmem:[#allocation2 + $0x10] sm:$0xff]
        %v451 = vld [vmem:[#allocation2 + $0x18] sm:$0xff]
        %452 = vadd.xlane.f32.xlu0 %v448
        %v453 = vpop.xlane.xlu0 %452
        %454 = vadd.xlane.f32.xlu0 %v449
        %v455 = vpop.xlane.xlu0 %454
        %456 = vadd.xlane.f32.xlu0 %v450
        %v457 = vpop.xlane.xlu0 %456
        %458 = vadd.xlane.f32.xlu0 %v451
        %v459 = vpop.xlane.xlu0 %458
        %v460 = vmul.f32 %v453, 0.00390625
        %v461 = vmul.f32 %v455, 0.00390625
        %v462 = vmul.f32 %v457, 0.00390625
        %v463 = vmul.f32 %v459, 0.00390625
        %v464 = vld [vmem:[%s3] sm:$0xf]
        %v465 = vld [vmem:[%s3 + $0x4] sm:$0xf]
        %v466 = vpack.c.bf16 %v461, %v460
        %v467 = vpack.c.bf16 %v463, %v462
        %v468 = vld [vmem:[%s4] sm:$0xff]
        %v469 = vld [vmem:[%s4 + $0x8] sm:$0xff]
        %v472 = vunpack.c.l.b16 %v464
        %v473 = vunpack.c.l.b16 %v465
        %v474 = vpack.c.b16 %v473, %v472
        %vm475 = vcmask 261120
        %v477 = vsel %vm475, %v474, 0
        %479 = vmatprep.subr.bf16.mxu0 0
        %480 = vmatpush1.bf16.msra.mxu0 %v466
        %481 = vmatprep.subr.bf16.mxu0 0
        %482 = vmatpush1.bf16.msra.mxu0 %v467
        %483 = vmatprep.subr.bf16.mxu0 0
        %484 = vmatpush1.bf16.msra.mxu0 0
        %485 = vmatprep.subr.bf16.mxu0 0
        %486 = vmatpush1.bf16.msra.mxu0 0
        %487 = vmatprep.subr.bf16.mxu0 0
        %488 = vmatpush1.bf16.msra.mxu0 0
        %489 = vmatprep.subr.bf16.mxu0 0
        %490 = vmatpush1.bf16.msra.mxu0 0
        %491 = vmatprep.subr.bf16.mxu0 0
        %492 = vmatpush1.bf16.msra.mxu0 0
        %493 = vmatprep.subr.bf16.mxu0 0
        %494 = vmatpush1.bf16.msra.mxu0 0
        %495 = vmatprep.subr.bf16.mxu0 0
        %496 = vmatpush1.bf16.msra.mxu0 0
        %497 = vmatprep.subr.bf16.mxu0 0
        %498 = vmatpush1.bf16.msra.mxu0 0
        %499 = vmatprep.subr.bf16.mxu0 0
        %500 = vmatpush1.bf16.msra.mxu0 0
        %501 = vmatprep.subr.bf16.mxu0 0
        %502 = vmatpush1.bf16.msra.mxu0 0
        %503 = vmatprep.subr.bf16.mxu0 0
        %504 = vmatpush1.bf16.msra.mxu0 0
        %505 = vmatprep.subr.bf16.mxu0 0
        %506 = vmatpush1.bf16.msra.mxu0 0
        %507 = vmatprep.subr.bf16.mxu0 0
        %508 = vmatpush1.bf16.msra.mxu0 0
        %509 = vmatprep.subr.bf16.mxu0 0
        %510 = vmatpush1.bf16.msra.mxu0 0
        %511 = vmatprep.mubr.bf16.mxu0 0
        %512 = vmatmul.mubr.bf16.gmra.mrb[0].mxu0 %v477
        %v513 = vpop.f32.mrb[0].mxu0
        %v514 = vadd.f32 %v468, %v513
        %v515 = vpop.f32.mrb[0].mxu0
        %v516 = vpop.f32.mrb[0].mxu0
        %v517 = vadd.f32 %v469, %v516
        %v518 = vpop.f32.mrb[0].mxu0
        %519 = vdwg.mxu0
        %vm520 = vcmask 7168
        %v521 = vsel %vm520, %v514, -inf
        %v522 = vsel %vm520, %v517, -inf
        %v523 = vmax.f32 %v521, %v522
        %524 = vmax.xlane.f32.xlu0 %v523
        %v525 = vpop.xlane.xlu0 %524
        %v526 = vrot.slane %v525, 4
        %v527 = vmax.f32 %v525, %v526
        %v528 = vrot.slane %v527, 2
        %v529 = vmax.f32 %v527, %v528
        %v530 = vrot.slane %v529, 1
        %v531 = vmax.f32 %v529, %v530
        %s532 = vtos %v531
        %v533 = vstv %s532
        %v534 = vsub.f32 %v514, %v533
        %v535 = vsub.f32 %v517, %v533
        %v536 = vmul.f32 %v534, 1.442695
        %v537 = vpow.pop %v536
        %v538 = vmul.f32 %v535, 1.442695
        %v539 = vpow.pop %v538
        %v540 = vsel %vm520, %v537, 0.0
        %v541 = vsel %vm520, %v539, 0.0
        %v542 = vadd.f32 %v540, %v541
        %543 = vadd.xlane.f32.xlu0 %v542
        %v544 = vpop.xlane.xlu0 %543
        %v545 = vrot.slane %v544, 4
        %v546 = vadd.f32 %v544, %v545
        %v547 = vrot.slane %v546, 2
        %v548 = vadd.f32 %v546, %v547
        %v549 = vrot.slane %v548, 1
        %v550 = vadd.f32 %v548, %v549
        %s551 = vtos %v550
        %v552 = vstv %s551
        %v553 = vrcp.pop %v552
        %v554 = vmul.f32 %v537, %v553
        %v555 = vmul.f32 %v539, %v553
        %556 = vst.msk [vmem:[%s252] sm:$0xff] %vm520, %v554
        %557 = vst.msk [vmem:[%s252 + $0x8] sm:$0xff] %vm520, %v555
      $region48: #{_classify_core.1} parent=39 // pred_fallthru
        _
      %p558 = scmp.lt.s32.totalorder %s20, 1
      %s559 = scalar_select %p558, %s20, 1
      %s560 = smul.addr %s559, 2
      %s561 = smul.addr %s560, 8
      %s562 = scalar_lea.vmem %s5, %s561
      // Predicated region
      $region49: #{_classify_core.1} parent=39 // pred_check
        %p563 = pneg %p158
      $region50: #{_classify_core.1} parent=39 // pred_check_branch
        %565 = sbr.rel (%p563) target = $region52
      $region51: #{_classify_core.1} parent=39 // pred_region
        _
      $region52: #{_classify_core.1} parent=39 // pred_fallthru
        _
    $region40: #{_classify_core.1} parent=5 // pred_fallthru
      _
    %p566 = scmp.le.s32.totalorder 2, %s11
    // Predicated region
    $region53: #{_classify_core.1} parent=5 // pred_check
      %p567 = pneg %p566
    $region54: #{_classify_core.1} parent=5 // pred_check_branch
      %569 = sbr.rel (%p567) target = $region56
    $region55: #{_classify_core.1} parent=5 // pred_region
      %s570 = ssub.s32 %s11, 2
      // Predicated region
      $region57: #{_classify_core.1} parent=55 // pred_check
        %p571 = pneg %p164
      $region58: #{_classify_core.1} parent=55 // pred_check_branch
        %573 = sbr.rel (%p571) target = $region60
      $region59: #{_classify_core.1} parent=55 // pred_region
        %p574 = scmp.lt.s32.totalorder %s22, 1
        %s575 = scalar_select %p574, %s22, 1
        %s576 = smul.addr %s575, 2
        %s577 = smul.addr %s576, 8
        %s578 = scalar_lea.vmem %s5, %s577
      $region60: #{_classify_core.1} parent=55 // pred_fallthru
        _
    $region56: #{_classify_core.1} parent=5 // pred_fallthru
      _
  $region6: #{_classify_core.1} parent=0 // loop_footer
    %s15 = sadd.s32 1, %s11
  $region7: #{_classify_core.1} parent=0 // loop_footer_branch
    %10 = sbr.rel target = $region3
  $region8: #{_classify_core.1} parent=0 // loop_exit
    _

</llo_original>
